<compile_context>
chip_gen: v6e
topology: v6e:2x2x1
jax: 0.10.0
libtpu: 0.0.40
codegen_flags: <defaults>
</compile_context>

<pallas_src>
import functools

import jax
import jax.numpy as jnp
from jax import lax
from jax.experimental import pallas as pl
from jax.experimental.pallas import tpu as pltpu

EPS = 1e-5       # nn.InstanceNorm2d default eps
SLOPE = 0.2      # LeakyReLU slope

MAX_BLOCK_LANES = 16384      # lane-tile budget per grid step (keeps VMEM modest)
MAX_IMAGES_PER_BLOCK = 8


def _leaky(x):
    return jnp.where(x >= 0, x, SLOPE * x)


def _convfuse_kernel(x_ref, w1_ref, wa_ref, wb_ref, gbt_ref, o_ref,
                     *, height, width, half):
    # x_ref : (Cin, M)   M = NB*H*W lanes (NB whole images packed along lanes)
    # o_ref : (Co,  M)
    co, m_lanes = o_ref.shape
    hw = height * width
    nb = m_lanes // hw

    # ---- border masks from iota (no mask-array DMA) -------------------------
    idx = lax.broadcasted_iota(jnp.int32, (1, m_lanes), 1)
    if ((width & (width - 1)) == 0) and ((height & (height - 1)) == 0):
        col = jnp.bitwise_and(idx, width - 1)
        row = jnp.bitwise_and(jnp.right_shift(idx, width.bit_length() - 1),
                              height - 1)
    else:
        # TODO(synk): non-power-of-two spatial dims rely on Mosaic i32 vector
        # div/rem; pass precomputed row/col indices instead if unsupported.
        col = jnp.remainder(idx, width)
        row = jnp.remainder(jnp.floor_divide(idx, width), height)
    m_top = (row >= 1).astype(jnp.float32)              # input row h-1 valid
    m_bot = (row <= height - 2).astype(jnp.float32)     # input row h+1 valid
    m_left = (col >= 1).astype(jnp.float32)             # input col w-1 valid
    m_right = (col <= width - 2).astype(jnp.float32)    # input col w+1 valid

    ones_row = jnp.ones((1, m_lanes), jnp.float32)

    def conv3x3(act, w):
        # act: (Ci, M) f32 ;  w: (3*Co, 3*Ci+1) with bias folded into the last
        # column of the centre (kx==1) row group (paired with ones_row).
        up = jnp.roll(act, width, axis=1) * m_top        # input row h-1
        dn = jnp.roll(act, -width, axis=1) * m_bot       # input row h+1
        stack = jnp.concatenate([up, act, dn, ones_row], axis=0)  # (3*Ci+1, M)
        g = jnp.dot(w, stack, preferred_element_type=jnp.float32)  # (3*Co, M)
        # dx shifts applied to the (Co, M) results instead of the inputs.
        left = jnp.roll(g[0:co], 1, axis=1) * m_left              # kx = 0 taps
        right = jnp.roll(g[2 * co:3 * co], -1, axis=1) * m_right  # kx = 2 taps
        return g[co:2 * co] + left + right

    x = x_ref[...].astype(jnp.float32)                   # (Cin, M)

    out = conv3x3(x, w1_ref[...])                        # ConvFuse.conv1
    resi = _leaky(conv3x3(out, wa_ref[...]))             # HinResBlock.conv_1

    # ---- Half-Instance-Norm: one-pass stats, segmented per image ------------
    gamma = gbt_ref[:, 0:1]                              # (Co, 1)
    beta = gbt_ref[:, 1:2]
    sel = lax.broadcasted_iota(jnp.int32, (co, 1), 0) < half
    inv_hw = 1.0 / hw
    pieces = []
    for b in range(nb):                                  # static unroll; nb small
        seg = resi[:, b * hw:(b + 1) * hw]               # (Co, HW) aligned slice
        mean = jnp.sum(seg, axis=1, keepdims=True) * inv_hw
        var = jnp.sum(seg * seg, axis=1, keepdims=True) * inv_hw - mean * mean
        scale = jnp.where(sel, gamma * lax.rsqrt(var + EPS), 1.0)
        shift = jnp.where(sel, beta - mean * scale, 0.0)
        pieces.append(seg * scale + shift)               # identity on 2nd half
    resi = pieces[0] if nb == 1 else jnp.concatenate(pieces, axis=1)

    resi = _leaky(conv3x3(resi, wb_ref[...]))            # HinResBlock.conv_2
    hin = out + resi                                     # HinResBlock(out)
    o_ref[...] = (out + hin).astype(o_ref.dtype)         # ConvFuse output


def _prep_conv_weight(w, b):
    # OIHW (o, ci, ky, kx) -> row = kx*Co + o, col = ky*Ci + ci, with the bias
    # folded as an extra column hitting only the centre (kx == 1) row group.
    co, ci = w.shape[0], w.shape[1]
    wm = jnp.transpose(w.astype(jnp.float32), (3, 0, 2, 1)).reshape(3 * co, 3 * ci)
    bias_col = jnp.zeros((3 * co, 1), jnp.float32)
    bias_col = bias_col.at[co:2 * co, 0].set(b.astype(jnp.float32))
    return jnp.concatenate([wm, bias_col], axis=1)       # (3*Co, 3*Ci+1)


def convfuse_forward(ms, pan, params):
    """ms, pan: NCHW float32 -> NCHW float32 output (matches PyTorch)."""
    N, Cms, H, W = ms.shape
    Cpan = pan.shape[1]
    Cin = Cms + Cpan
    HW = H * W
    Co = params['conv1_w'].shape[0]
    half = Co // 2

    # Fold the batch into the lane axis: (Cin, N*H*W), NB whole images / step.
    nb = max(1, min(N, MAX_IMAGES_PER_BLOCK, MAX_BLOCK_LANES // HW))
    while N % nb:
        nb -= 1
    Mb = nb * HW

    x = jnp.concatenate([ms, pan], axis=1)                       # (N, Cin, H, W)
    x_l = jnp.transpose(x, (1, 0, 2, 3)).reshape(Cin, N * HW)    # lane-dense

    w1 = _prep_conv_weight(params['conv1_w'], params['conv1_b'])
    wa = _prep_conv_weight(params['hin_conv1_w'], params['hin_conv1_b'])
    wb = _prep_conv_weight(params['hin_conv2_w'], params['hin_conv2_b'])
    gamma = jnp.concatenate([params['norm_w'].astype(jnp.float32),
                             jnp.ones((Co - half,), jnp.float32)])
    beta = jnp.concatenate([params['norm_b'].astype(jnp.float32),
                            jnp.zeros((Co - half,), jnp.float32)])
    gbt = jnp.stack([gamma, beta], axis=1)                       # (Co, 2)

    def rep(shape):
        nd = len(shape)
        return pl.BlockSpec(shape, lambda n: (0,) * nd)

    kernel = functools.partial(_convfuse_kernel, height=H, width=W, half=half)

    flops = 2 * N * HW * (Co * 9 * Cin + 2 * Co * 9 * Co)
    bytes_accessed = 4 * (Cin * N * HW + Co * N * HW
                          + w1.size + wa.size + wb.size + gbt.size)
    cost = pl.CostEstimate(flops=int(flops), transcendentals=int(Co * N),
                           bytes_accessed=int(bytes_accessed))

    out = pl.pallas_call(
        kernel,
        out_shape=jax.ShapeDtypeStruct((Co, N * HW), jnp.float32),
        grid_spec=pltpu.PrefetchScalarGridSpec(
            num_scalar_prefetch=0,
            grid=(N // nb,),
            in_specs=[
                pl.BlockSpec((Cin, Mb), lambda n: (0, n)),
                rep(w1.shape), rep(wa.shape), rep(wb.shape), rep(gbt.shape),
            ],
            out_specs=pl.BlockSpec((Co, Mb), lambda n: (0, n)),
        ),
        compiler_params=pltpu.CompilerParams(
            dimension_semantics=("parallel",)),
        cost_estimate=cost,
    )(x_l, w1, wa, wb, gbt)

    return jnp.transpose(out.reshape(Co, N, H, W), (1, 0, 2, 3))   # NCHW


# --- plain-JAX reference (for correctness check only) ---
def _conv2d_nchw(x, w, b):
    y = lax.conv_general_dilated(x, w, (1, 1), ((1, 1), (1, 1)),
                                 dimension_numbers=('NCHW', 'OIHW', 'NCHW'))
    return y + b[None, :, None, None]


def convfuse_reference(ms, pan, p):
    x = jnp.concatenate([ms, pan], axis=1)
    out = _conv2d_nchw(x, p['conv1_w'], p['conv1_b'])
    resi = jax.nn.leaky_relu(
        _conv2d_nchw(out, p['hin_conv1_w'], p['hin_conv1_b']), SLOPE)
    half = resi.shape[1] // 2
    p1, p2 = resi[:, :half], resi[:, half:]
    mean = p1.mean(axis=(2, 3), keepdims=True)
    var = ((p1 - mean) ** 2).mean(axis=(2, 3), keepdims=True)
    p1n = (p1 - mean) * lax.rsqrt(var + EPS)
    p1n = p1n * p['norm_w'][None, :, None, None] + p['norm_b'][None, :, None, None]
    resi = jnp.concatenate([p1n, p2], axis=1)
    resi = jax.nn.leaky_relu(
        _conv2d_nchw(resi, p['hin_conv2_w'], p['hin_conv2_b']), SLOPE)
    return out + (out + resi)


if __name__ == "__main__":
    key = jax.random.PRNGKey(0)
    N, Cms, Cpan, H, W = 2, 4, 4, 16, 16
    in_size = Cms + Cpan          # channels of cat([ms, pan], dim=1)
    out_size = 8                  # must be even (HIN splits channels in half)

    ks = jax.random.split(key, 10)
    ms = jax.random.normal(ks[0], (N, Cms, H, W), jnp.float32)
    pan = jax.random.normal(ks[1], (N, Cpan, H, W), jnp.float32)
    params = {
        'conv1_w': 0.1 * jax.random.normal(ks[2], (out_size, in_size, 3, 3), jnp.float32),
        'conv1_b': 0.1 * jax.random.normal(ks[3], (out_size,), jnp.float32),
        'hin_conv1_w': 0.1 * jax.random.normal(ks[4], (out_size, out_size, 3, 3), jnp.float32),
        'hin_conv1_b': 0.1 * jax.random.normal(ks[5], (out_size,), jnp.float32),
        'hin_conv2_w': 0.1 * jax.random.normal(ks[6], (out_size, out_size, 3, 3), jnp.float32),
        'hin_conv2_b': 0.1 * jax.random.normal(ks[7], (out_size,), jnp.float32),
        'norm_w': 1.0 + 0.1 * jax.random.normal(ks[8], (out_size // 2,), jnp.float32),
        'norm_b': 0.1 * jax.random.normal(ks[9], (out_size // 2,), jnp.float32),
    }

    out = convfuse_forward(ms, pan, params)
    jax.block_until_ready(out)

    ref = convfuse_reference(ms, pan, params)
    assert out.shape == (N, out_size, H, W)
    err = float(jnp.max(jnp.abs(out - ref)))
    assert jnp.allclose(out, ref, atol=1e-4, rtol=1e-4), err
    print("KERNEL_OK")
</pallas_src>

<mosaic_0001>
module attributes {stable_mosaic.version = 11 : i64} {
  func.func @_convfuse_kernel(%arg0: i32, %arg1: memref<8x512xf32, #tpu.memory_space<vmem>>, %arg2: memref<24x25xf32, #tpu.memory_space<vmem>>, %arg3: memref<24x25xf32, #tpu.memory_space<vmem>>, %arg4: memref<24x25xf32, #tpu.memory_space<vmem>>, %arg5: memref<8x2xf32, #tpu.memory_space<vmem>>, %arg6: memref<8x512xf32, #tpu.memory_space<vmem>>) attributes {dimension_semantics = [#tpu.dimension_semantics<parallel>], iteration_bounds = array<i64: 1>, scalar_prefetch = 0 : i64, scratch_operands = 0 : i64, tpu.core_type = #tpu.core_type<tc>, window_params = [{transform_indices = @transform_0, window_bounds = array<i64: 8, 512>}, {pipeline_mode = #tpu.pipeline_mode<synchronous>, transform_indices = @transform_1, window_bounds = array<i64: 24, 25>}, {pipeline_mode = #tpu.pipeline_mode<synchronous>, transform_indices = @transform_2, window_bounds = array<i64: 24, 25>}, {pipeline_mode = #tpu.pipeline_mode<synchronous>, transform_indices = @transform_3, window_bounds = array<i64: 24, 25>}, {pipeline_mode = #tpu.pipeline_mode<synchronous>, transform_indices = @transform_4, window_bounds = array<i64: 8, 2>}, {transform_indices = @transform_5, window_bounds = array<i64: 8, 512>}]} {
    %0 = tpu.iota {dimensions = array<i32: 1>} : vector<1x512xi32>
    %c15_i32 = arith.constant 15 : i32
    %1 = vector.broadcast %c15_i32 : i32 to vector<1x512xi32>
    %2 = arith.andi %0, %1 : vector<1x512xi32>
    %c4_i32 = arith.constant 4 : i32
    %3 = vector.broadcast %c4_i32 : i32 to vector<1x512xi32>
    %4 = arith.shrsi %0, %3 : vector<1x512xi32>
    %c15_i32_0 = arith.constant 15 : i32
    %5 = vector.broadcast %c15_i32_0 : i32 to vector<1x512xi32>
    %6 = arith.andi %4, %5 : vector<1x512xi32>
    %c1_i32 = arith.constant 1 : i32
    %7 = vector.broadcast %c1_i32 : i32 to vector<1x512xi32>
    %8 = arith.cmpi sge, %6, %7 : vector<1x512xi32>
    %9 = arith.extui %8 : vector<1x512xi1> to vector<1x512xi32>
    %10 = arith.sitofp %9 : vector<1x512xi32> to vector<1x512xf32>
    %c14_i32 = arith.constant 14 : i32
    %11 = vector.broadcast %c14_i32 : i32 to vector<1x512xi32>
    %12 = arith.cmpi sle, %6, %11 : vector<1x512xi32>
    %13 = arith.extui %12 : vector<1x512xi1> to vector<1x512xi32>
    %14 = arith.sitofp %13 : vector<1x512xi32> to vector<1x512xf32>
    %c1_i32_1 = arith.constant 1 : i32
    %15 = vector.broadcast %c1_i32_1 : i32 to vector<1x512xi32>
    %16 = arith.cmpi sge, %2, %15 : vector<1x512xi32>
    %17 = arith.extui %16 : vector<1x512xi1> to vector<1x512xi32>
    %18 = arith.sitofp %17 : vector<1x512xi32> to vector<1x512xf32>
    %c14_i32_2 = arith.constant 14 : i32
    %19 = vector.broadcast %c14_i32_2 : i32 to vector<1x512xi32>
    %20 = arith.cmpi sle, %2, %19 : vector<1x512xi32>
    %21 = arith.extui %20 : vector<1x512xi1> to vector<1x512xi32>
    %22 = arith.sitofp %21 : vector<1x512xi32> to vector<1x512xf32>
    %cst = arith.constant 1.000000e+00 : f32
    %23 = vector.broadcast %cst : f32 to vector<1x512xf32>
    %c0 = arith.constant 0 : index
    %c0_3 = arith.constant 0 : index
    %24 = vector.load %arg1[%c0, %c0_3] : memref<8x512xf32, #tpu.memory_space<vmem>>, vector<8x512xf32>
    %c0_4 = arith.constant 0 : index
    %c0_5 = arith.constant 0 : index
    %25 = vector.load %arg2[%c0_4, %c0_5] : memref<24x25xf32, #tpu.memory_space<vmem>>, vector<24x25xf32>
    %26 = vector.extract_strided_slice %24 {offsets = [0, 496], sizes = [8, 16], strides = [1, 1]} : vector<8x512xf32> to vector<8x16xf32>
    %27 = vector.extract_strided_slice %24 {offsets = [0, 0], sizes = [8, 496], strides = [1, 1]} : vector<8x512xf32> to vector<8x496xf32>
    %28 = tpu.concatenate %26, %27 in 1 : vector<8x16xf32>, vector<8x496xf32> -> vector<8x512xf32>
    %29 = vector.broadcast %10 : vector<1x512xf32> to vector<8x512xf32>
    %30 = arith.mulf %28, %29 : vector<8x512xf32>
    %31 = vector.extract_strided_slice %24 {offsets = [0, 16], sizes = [8, 496], strides = [1, 1]} : vector<8x512xf32> to vector<8x496xf32>
    %32 = vector.extract_strided_slice %24 {offsets = [0, 0], sizes = [8, 16], strides = [1, 1]} : vector<8x512xf32> to vector<8x16xf32>
    %33 = tpu.concatenate %31, %32 in 1 : vector<8x496xf32>, vector<8x16xf32> -> vector<8x512xf32>
    %34 = vector.broadcast %14 : vector<1x512xf32> to vector<8x512xf32>
    %35 = arith.mulf %33, %34 : vector<8x512xf32>
    %36 = tpu.concatenate %30, %24, %35, %23 in 0 : vector<8x512xf32>, vector<8x512xf32>, vector<8x512xf32>, vector<1x512xf32> -> vector<25x512xf32>
    %cst_6 = arith.constant dense<0.000000e+00> : vector<24x512xf32>
    %37 = tpu.matmul %25, %36, %cst_6 {dimension_numbers = #tpu.dot_dimension_numbers<[1], [0], [0], [1], [0, 0, 1, 1], [], []>} : vector<24x25xf32>, vector<25x512xf32>, vector<24x512xf32> -> vector<24x512xf32>
    %38 = vector.extract_strided_slice %37 {offsets = [0, 0], sizes = [8, 512], strides = [1, 1]} : vector<24x512xf32> to vector<8x512xf32>
    %39 = vector.extract_strided_slice %38 {offsets = [0, 511], sizes = [8, 1], strides = [1, 1]} : vector<8x512xf32> to vector<8x1xf32>
    %40 = vector.extract_strided_slice %38 {offsets = [0, 0], sizes = [8, 511], strides = [1, 1]} : vector<8x512xf32> to vector<8x511xf32>
    %41 = tpu.concatenate %39, %40 in 1 : vector<8x1xf32>, vector<8x511xf32> -> vector<8x512xf32>
    %42 = vector.broadcast %18 : vector<1x512xf32> to vector<8x512xf32>
    %43 = arith.mulf %41, %42 : vector<8x512xf32>
    %44 = vector.extract_strided_slice %37 {offsets = [16, 0], sizes = [8, 512], strides = [1, 1]} : vector<24x512xf32> to vector<8x512xf32>
    %45 = vector.extract_strided_slice %44 {offsets = [0, 1], sizes = [8, 511], strides = [1, 1]} : vector<8x512xf32> to vector<8x511xf32>
    %46 = vector.extract_strided_slice %44 {offsets = [0, 0], sizes = [8, 1], strides = [1, 1]} : vector<8x512xf32> to vector<8x1xf32>
    %47 = tpu.concatenate %45, %46 in 1 : vector<8x511xf32>, vector<8x1xf32> -> vector<8x512xf32>
    %48 = vector.broadcast %22 : vector<1x512xf32> to vector<8x512xf32>
    %49 = arith.mulf %47, %48 : vector<8x512xf32>
    %50 = vector.extract_strided_slice %37 {offsets = [8, 0], sizes = [8, 512], strides = [1, 1]} : vector<24x512xf32> to vector<8x512xf32>
    %51 = arith.addf %50, %43 : vector<8x512xf32>
    %52 = arith.addf %51, %49 : vector<8x512xf32>
    %c0_7 = arith.constant 0 : index
    %c0_8 = arith.constant 0 : index
    %53 = vector.load %arg3[%c0_7, %c0_8] : memref<24x25xf32, #tpu.memory_space<vmem>>, vector<24x25xf32>
    %54 = vector.extract_strided_slice %52 {offsets = [0, 496], sizes = [8, 16], strides = [1, 1]} : vector<8x512xf32> to vector<8x16xf32>
    %55 = vector.extract_strided_slice %52 {offsets = [0, 0], sizes = [8, 496], strides = [1, 1]} : vector<8x512xf32> to vector<8x496xf32>
    %56 = tpu.concatenate %54, %55 in 1 : vector<8x16xf32>, vector<8x496xf32> -> vector<8x512xf32>
    %57 = vector.broadcast %10 : vector<1x512xf32> to vector<8x512xf32>
    %58 = arith.mulf %56, %57 : vector<8x512xf32>
    %59 = vector.extract_strided_slice %52 {offsets = [0, 16], sizes = [8, 496], strides = [1, 1]} : vector<8x512xf32> to vector<8x496xf32>
    %60 = vector.extract_strided_slice %52 {offsets = [0, 0], sizes = [8, 16], strides = [1, 1]} : vector<8x512xf32> to vector<8x16xf32>
    %61 = tpu.concatenate %59, %60 in 1 : vector<8x496xf32>, vector<8x16xf32> -> vector<8x512xf32>
    %62 = vector.broadcast %14 : vector<1x512xf32> to vector<8x512xf32>
    %63 = arith.mulf %61, %62 : vector<8x512xf32>
    %64 = tpu.concatenate %58, %52, %63, %23 in 0 : vector<8x512xf32>, vector<8x512xf32>, vector<8x512xf32>, vector<1x512xf32> -> vector<25x512xf32>
    %cst_9 = arith.constant dense<0.000000e+00> : vector<24x512xf32>
    %65 = tpu.matmul %53, %64, %cst_9 {dimension_numbers = #tpu.dot_dimension_numbers<[1], [0], [0], [1], [0, 0, 1, 1], [], []>} : vector<24x25xf32>, vector<25x512xf32>, vector<24x512xf32> -> vector<24x512xf32>
    %66 = vector.extract_strided_slice %65 {offsets = [0, 0], sizes = [8, 512], strides = [1, 1]} : vector<24x512xf32> to vector<8x512xf32>
    %67 = vector.extract_strided_slice %66 {offsets = [0, 511], sizes = [8, 1], strides = [1, 1]} : vector<8x512xf32> to vector<8x1xf32>
    %68 = vector.extract_strided_slice %66 {offsets = [0, 0], sizes = [8, 511], strides = [1, 1]} : vector<8x512xf32> to vector<8x511xf32>
    %69 = tpu.concatenate %67, %68 in 1 : vector<8x1xf32>, vector<8x511xf32> -> vector<8x512xf32>
    %70 = vector.broadcast %18 : vector<1x512xf32> to vector<8x512xf32>
    %71 = arith.mulf %69, %70 : vector<8x512xf32>
    %72 = vector.extract_strided_slice %65 {offsets = [16, 0], sizes = [8, 512], strides = [1, 1]} : vector<24x512xf32> to vector<8x512xf32>
    %73 = vector.extract_strided_slice %72 {offsets = [0, 1], sizes = [8, 511], strides = [1, 1]} : vector<8x512xf32> to vector<8x511xf32>
    %74 = vector.extract_strided_slice %72 {offsets = [0, 0], sizes = [8, 1], strides = [1, 1]} : vector<8x512xf32> to vector<8x1xf32>
    %75 = tpu.concatenate %73, %74 in 1 : vector<8x511xf32>, vector<8x1xf32> -> vector<8x512xf32>
    %76 = vector.broadcast %22 : vector<1x512xf32> to vector<8x512xf32>
    %77 = arith.mulf %75, %76 : vector<8x512xf32>
    %78 = vector.extract_strided_slice %65 {offsets = [8, 0], sizes = [8, 512], strides = [1, 1]} : vector<24x512xf32> to vector<8x512xf32>
    %79 = arith.addf %78, %71 : vector<8x512xf32>
    %80 = arith.addf %79, %77 : vector<8x512xf32>
    %cst_10 = arith.constant 0.000000e+00 : f32
    %81 = vector.broadcast %cst_10 : f32 to vector<8x512xf32>
    %82 = arith.cmpf oge, %80, %81 : vector<8x512xf32>
    %cst_11 = arith.constant 2.000000e-01 : f32
    %83 = vector.broadcast %cst_11 : f32 to vector<8x512xf32>
    %84 = arith.mulf %83, %80 : vector<8x512xf32>
    %85 = arith.select %82, %80, %84 : vector<8x512xi1>, vector<8x512xf32>
    %c0_12 = arith.constant 0 : index
    %c0_13 = arith.constant 0 : index
    %86 = vector.load %arg5[%c0_12, %c0_13] : memref<8x2xf32, #tpu.memory_space<vmem>>, vector<8x1xf32>
    %c0_14 = arith.constant 0 : index
    %c1 = arith.constant 1 : index
    %87 = vector.load %arg5[%c0_14, %c1] : memref<8x2xf32, #tpu.memory_space<vmem>>, vector<8x1xf32>
    %88 = tpu.iota {dimensions = array<i32: 0>} : vector<8x1xi32>
    %c4_i32_15 = arith.constant 4 : i32
    %89 = vector.broadcast %c4_i32_15 : i32 to vector<8x1xi32>
    %90 = arith.cmpi slt, %88, %89 : vector<8x1xi32>
    %91 = vector.extract_strided_slice %85 {offsets = [0, 0], sizes = [8, 256], strides = [1, 1]} : vector<8x512xf32> to vector<8x256xf32>
    %cst_16 = arith.constant dense<0.000000e+00> : vector<8xf32>
    %92 = vector.multi_reduction <add>, %91, %cst_16 [1] : vector<8x256xf32> to vector<8xf32>
    %93 = vector.shape_cast %92 : vector<8xf32> to vector<8x1xf32>
    %cst_17 = arith.constant 3.906250e-03 : f32
    %94 = vector.broadcast %cst_17 : f32 to vector<8x1xf32>
    %95 = arith.mulf %93, %94 : vector<8x1xf32>
    %96 = arith.mulf %91, %91 : vector<8x256xf32>
    %cst_18 = arith.constant dense<0.000000e+00> : vector<8xf32>
    %97 = vector.multi_reduction <add>, %96, %cst_18 [1] : vector<8x256xf32> to vector<8xf32>
    %98 = vector.shape_cast %97 : vector<8xf32> to vector<8x1xf32>
    %cst_19 = arith.constant 3.906250e-03 : f32
    %99 = vector.broadcast %cst_19 : f32 to vector<8x1xf32>
    %100 = arith.mulf %98, %99 : vector<8x1xf32>
    %101 = arith.mulf %95, %95 : vector<8x1xf32>
    %102 = arith.subf %100, %101 : vector<8x1xf32>
    %cst_20 = arith.constant 9.99999974E-6 : f32
    %103 = vector.broadcast %cst_20 : f32 to vector<8x1xf32>
    %104 = arith.addf %102, %103 : vector<8x1xf32>
    %105 = math.rsqrt %104 : vector<8x1xf32>
    %106 = arith.mulf %86, %105 : vector<8x1xf32>
    %cst_21 = arith.constant 1.000000e+00 : f32
    %107 = vector.broadcast %cst_21 : f32 to vector<8x1xf32>
    %108 = arith.select %90, %106, %107 : vector<8x1xi1>, vector<8x1xf32>
    %109 = arith.mulf %95, %108 : vector<8x1xf32>
    %110 = arith.subf %87, %109 : vector<8x1xf32>
    %cst_22 = arith.constant 0.000000e+00 : f32
    %111 = vector.broadcast %cst_22 : f32 to vector<8x1xf32>
    %112 = arith.select %90, %110, %111 : vector<8x1xi1>, vector<8x1xf32>
    %113 = vector.broadcast %108 : vector<8x1xf32> to vector<8x256xf32>
    %114 = arith.mulf %91, %113 : vector<8x256xf32>
    %115 = vector.broadcast %112 : vector<8x1xf32> to vector<8x256xf32>
    %116 = arith.addf %114, %115 : vector<8x256xf32>
    %117 = vector.extract_strided_slice %85 {offsets = [0, 256], sizes = [8, 256], strides = [1, 1]} : vector<8x512xf32> to vector<8x256xf32>
    %cst_23 = arith.constant dense<0.000000e+00> : vector<8xf32>
    %118 = vector.multi_reduction <add>, %117, %cst_23 [1] : vector<8x256xf32> to vector<8xf32>
    %119 = vector.shape_cast %118 : vector<8xf32> to vector<8x1xf32>
    %cst_24 = arith.constant 3.906250e-03 : f32
    %120 = vector.broadcast %cst_24 : f32 to vector<8x1xf32>
    %121 = arith.mulf %119, %120 : vector<8x1xf32>
    %122 = arith.mulf %117, %117 : vector<8x256xf32>
    %cst_25 = arith.constant dense<0.000000e+00> : vector<8xf32>
    %123 = vector.multi_reduction <add>, %122, %cst_25 [1] : vector<8x256xf32> to vector<8xf32>
    %124 = vector.shape_cast %123 : vector<8xf32> to vector<8x1xf32>
    %cst_26 = arith.constant 3.906250e-03 : f32
    %125 = vector.broadcast %cst_26 : f32 to vector<8x1xf32>
    %126 = arith.mulf %124, %125 : vector<8x1xf32>
    %127 = arith.mulf %121, %121 : vector<8x1xf32>
    %128 = arith.subf %126, %127 : vector<8x1xf32>
    %cst_27 = arith.constant 9.99999974E-6 : f32
    %129 = vector.broadcast %cst_27 : f32 to vector<8x1xf32>
    %130 = arith.addf %128, %129 : vector<8x1xf32>
    %131 = math.rsqrt %130 : vector<8x1xf32>
    %132 = arith.mulf %86, %131 : vector<8x1xf32>
    %cst_28 = arith.constant 1.000000e+00 : f32
    %133 = vector.broadcast %cst_28 : f32 to vector<8x1xf32>
    %134 = arith.select %90, %132, %133 : vector<8x1xi1>, vector<8x1xf32>
    %135 = arith.mulf %121, %134 : vector<8x1xf32>
    %136 = arith.subf %87, %135 : vector<8x1xf32>
    %cst_29 = arith.constant 0.000000e+00 : f32
    %137 = vector.broadcast %cst_29 : f32 to vector<8x1xf32>
    %138 = arith.select %90, %136, %137 : vector<8x1xi1>, vector<8x1xf32>
    %139 = vector.broadcast %134 : vector<8x1xf32> to vector<8x256xf32>
    %140 = arith.mulf %117, %139 : vector<8x256xf32>
    %141 = vector.broadcast %138 : vector<8x1xf32> to vector<8x256xf32>
    %142 = arith.addf %140, %141 : vector<8x256xf32>
    %143 = tpu.concatenate %116, %142 in 1 : vector<8x256xf32>, vector<8x256xf32> -> vector<8x512xf32>
    %c0_30 = arith.constant 0 : index
    %c0_31 = arith.constant 0 : index
    %144 = vector.load %arg4[%c0_30, %c0_31] : memref<24x25xf32, #tpu.memory_space<vmem>>, vector<24x25xf32>
    %145 = vector.extract_strided_slice %143 {offsets = [0, 496], sizes = [8, 16], strides = [1, 1]} : vector<8x512xf32> to vector<8x16xf32>
    %146 = vector.extract_strided_slice %143 {offsets = [0, 0], sizes = [8, 496], strides = [1, 1]} : vector<8x512xf32> to vector<8x496xf32>
    %147 = tpu.concatenate %145, %146 in 1 : vector<8x16xf32>, vector<8x496xf32> -> vector<8x512xf32>
    %148 = vector.broadcast %10 : vector<1x512xf32> to vector<8x512xf32>
    %149 = arith.mulf %147, %148 : vector<8x512xf32>
    %150 = vector.extract_strided_slice %143 {offsets = [0, 16], sizes = [8, 496], strides = [1, 1]} : vector<8x512xf32> to vector<8x496xf32>
    %151 = vector.extract_strided_slice %143 {offsets = [0, 0], sizes = [8, 16], strides = [1, 1]} : vector<8x512xf32> to vector<8x16xf32>
    %152 = tpu.concatenate %150, %151 in 1 : vector<8x496xf32>, vector<8x16xf32> -> vector<8x512xf32>
    %153 = vector.broadcast %14 : vector<1x512xf32> to vector<8x512xf32>
    %154 = arith.mulf %152, %153 : vector<8x512xf32>
    %155 = tpu.concatenate %149, %143, %154, %23 in 0 : vector<8x512xf32>, vector<8x512xf32>, vector<8x512xf32>, vector<1x512xf32> -> vector<25x512xf32>
    %cst_32 = arith.constant dense<0.000000e+00> : vector<24x512xf32>
    %156 = tpu.matmul %144, %155, %cst_32 {dimension_numbers = #tpu.dot_dimension_numbers<[1], [0], [0], [1], [0, 0, 1, 1], [], []>} : vector<24x25xf32>, vector<25x512xf32>, vector<24x512xf32> -> vector<24x512xf32>
    %157 = vector.extract_strided_slice %156 {offsets = [0, 0], sizes = [8, 512], strides = [1, 1]} : vector<24x512xf32> to vector<8x512xf32>
    %158 = vector.extract_strided_slice %157 {offsets = [0, 511], sizes = [8, 1], strides = [1, 1]} : vector<8x512xf32> to vector<8x1xf32>
    %159 = vector.extract_strided_slice %157 {offsets = [0, 0], sizes = [8, 511], strides = [1, 1]} : vector<8x512xf32> to vector<8x511xf32>
    %160 = tpu.concatenate %158, %159 in 1 : vector<8x1xf32>, vector<8x511xf32> -> vector<8x512xf32>
    %161 = vector.broadcast %18 : vector<1x512xf32> to vector<8x512xf32>
    %162 = arith.mulf %160, %161 : vector<8x512xf32>
    %163 = vector.extract_strided_slice %156 {offsets = [16, 0], sizes = [8, 512], strides = [1, 1]} : vector<24x512xf32> to vector<8x512xf32>
    %164 = vector.extract_strided_slice %163 {offsets = [0, 1], sizes = [8, 511], strides = [1, 1]} : vector<8x512xf32> to vector<8x511xf32>
    %165 = vector.extract_strided_slice %163 {offsets = [0, 0], sizes = [8, 1], strides = [1, 1]} : vector<8x512xf32> to vector<8x1xf32>
    %166 = tpu.concatenate %164, %165 in 1 : vector<8x511xf32>, vector<8x1xf32> -> vector<8x512xf32>
    %167 = vector.broadcast %22 : vector<1x512xf32> to vector<8x512xf32>
    %168 = arith.mulf %166, %167 : vector<8x512xf32>
    %169 = vector.extract_strided_slice %156 {offsets = [8, 0], sizes = [8, 512], strides = [1, 1]} : vector<24x512xf32> to vector<8x512xf32>
    %170 = arith.addf %169, %162 : vector<8x512xf32>
    %171 = arith.addf %170, %168 : vector<8x512xf32>
    %cst_33 = arith.constant 0.000000e+00 : f32
    %172 = vector.broadcast %cst_33 : f32 to vector<8x512xf32>
    %173 = arith.cmpf oge, %171, %172 : vector<8x512xf32>
    %cst_34 = arith.constant 2.000000e-01 : f32
    %174 = vector.broadcast %cst_34 : f32 to vector<8x512xf32>
    %175 = arith.mulf %174, %171 : vector<8x512xf32>
    %176 = arith.select %173, %171, %175 : vector<8x512xi1>, vector<8x512xf32>
    %177 = arith.addf %52, %176 : vector<8x512xf32>
    %178 = arith.addf %52, %177 : vector<8x512xf32>
    %c0_35 = arith.constant 0 : index
    %c0_36 = arith.constant 0 : index
    %179 = vector.load %arg6[%c0_35, %c0_36] : memref<8x512xf32, #tpu.memory_space<vmem>>, vector<8x512xf32>
    tpu.vector_store %arg6[%c0_35, %c0_36], %178 {strides = array<i32>} : memref<8x512xf32, #tpu.memory_space<vmem>>, vector<8x512xf32>,
    return
  }
  func.func @transform_0(%arg0: i32) -> (i32, i32) {
    %c0_i32 = arith.constant 0 : i32
    %c0_i32_0 = arith.constant 0 : i32
    return %c0_i32, %arg0 : i32, i32
  }
  func.func @transform_1(%arg0: i32) -> (i32, i32) {
    %c0_i32 = arith.constant 0 : i32
    %c0_i32_0 = arith.constant 0 : i32
    %c0_i32_1 = arith.constant 0 : i32
    return %c0_i32, %c0_i32_0 : i32, i32
  }
  func.func @transform_2(%arg0: i32) -> (i32, i32) {
    %c0_i32 = arith.constant 0 : i32
    %c0_i32_0 = arith.constant 0 : i32
    %c0_i32_1 = arith.constant 0 : i32
    return %c0_i32, %c0_i32_0 : i32, i32
  }
  func.func @transform_3(%arg0: i32) -> (i32, i32) {
    %c0_i32 = arith.constant 0 : i32
    %c0_i32_0 = arith.constant 0 : i32
    %c0_i32_1 = arith.constant 0 : i32
    return %c0_i32, %c0_i32_0 : i32, i32
  }
  func.func @transform_4(%arg0: i32) -> (i32, i32) {
    %c0_i32 = arith.constant 0 : i32
    %c0_i32_0 = arith.constant 0 : i32
    %c0_i32_1 = arith.constant 0 : i32
    return %c0_i32, %c0_i32_0 : i32, i32
  }
  func.func @transform_5(%arg0: i32) -> (i32, i32) {
    %c0_i32 = arith.constant 0 : i32
    %c0_i32_0 = arith.constant 0 : i32
    return %c0_i32, %arg0 : i32, i32
  }
}

</mosaic_0001>

<llo_original>
// kernel: tpu_custom_call.1
$region0: #{tpu_custom_call.1}
  #allocation0 [shape = 'u32[]', space=smem, size = 0x4, offset = 0x4, fixed_abs, tag = 'smem constant byte address 0x4 - core index']
  #allocation1 [shape = 'u32[144,128]{1,0:T(1,128)}', space=vmem, size = 0x12000, scoped, tag = 'internal scratch']
  %s0 = inlined_call_operand.hbm [shape: f32[8,512], index: 0, kind: input, shape index: {}]
  %s1 = inlined_call_operand.hbm [shape: f32[24,25], index: 1, kind: input, shape index: {}]
  %s2 = inlined_call_operand.hbm [shape: f32[24,25], index: 2, kind: input, shape index: {}]
  %s3 = inlined_call_operand.hbm [shape: f32[24,25], index: 3, kind: input, shape index: {}]
  %s4 = inlined_call_operand.vmem [shape: f32[8,2], index: 4, kind: input, shape index: {}]
  %s5 = inlined_call_operand.hbm [shape: f32[8,512], index: 5, kind: output, shape index: {}]
  %s6 = sld [smem:[#allocation0]]
  $region46: #{tpu_custom_call.1} parent=0
    _
  %s8 = ssub.s32 1, %s6
  %s9 = scalar_select 0, %s8, %s6
  $region1: #{tpu_custom_call.1} parent=0
    #allocation2 [shape = 'u8[16384]{0}', space=vmem, size = 0x4000, scoped, tag = 'input window, operand 0, single buffered']
    #allocation3 [shape = 's32[1]{0}', space=sflag, size = 0x4, scoped, tag = 'scoped memory for tpu_custom_call.1']
    #allocation4 [shape = 's32[1]{0}', space=sflag, size = 0x4, scoped, tag = 'scoped memory for tpu_custom_call.1']
    #allocation5 [shape = 'u8[12288]{0}', space=vmem, size = 0x3000, scoped, tag = 'input window, operand 1, single buffered']
    #allocation6 [shape = 's32[1]{0}', space=sflag, size = 0x4, scoped, tag = 'scoped memory for tpu_custom_call.1']
    #allocation7 [shape = 'u8[12288]{0}', space=vmem, size = 0x3000, scoped, tag = 'input window, operand 2, single buffered']
    #allocation8 [shape = 'u8[12288]{0}', space=vmem, size = 0x3000, scoped, tag = 'input window, operand 3, single buffered']
    #allocation9 [shape = 's32[1]{0}', space=sflag, size = 0x4, scoped, tag = 'scoped memory for tpu_custom_call.1']
    #allocation10 [shape = 'u8[16384]{0}', space=vmem, size = 0x4000, scoped, tag = 'output window, operand 0, single buffered']
    %10 = vsyncpa [#allocation3], 0
    %11 = vsyncpa [#allocation6], 0
    %12 = vsyncpa [#allocation9], 0
    %13 = vsyncpa [#allocation4], 0
    // Predicated region
    $region2: #{tpu_custom_call.1} parent=1 // pred_check
      _
    $region3: #{tpu_custom_call.1} parent=1 // pred_check_branch
      %15 = sbr.rel (0) target = $region5
    $region4: #{tpu_custom_call.1} parent=1 // pred_region
      %s17 = ssub.s32 512, 512
      %18 = vsyncadd [#allocation3], %s17
      %s20 = sshll.u32 [#allocation2], 4
      %s21 = int_to_ptr.vmem [resolvable:$true] %s20
      %23 = dma.hbm_to_vmem [thread:$0]  %s0, 512, %s21, [#allocation3]
    $region5: #{tpu_custom_call.1} parent=1 // pred_fallthru
      _
    // Predicated region
    $region6: #{tpu_custom_call.1} parent=1 // pred_check
      _
    $region7: #{tpu_custom_call.1} parent=1 // pred_check_branch
      %25 = sbr.rel (0) target = $region9
    $region8: #{tpu_custom_call.1} parent=1 // pred_region
      %s27 = ssub.s32 384, 384
      %28 = vsyncadd [#allocation6], %s27
      %s29 = sshll.u32 [#allocation5], 4
      %s30 = int_to_ptr.vmem [resolvable:$true] %s29
      %35 = dma.hbm_to_vmem [thread:$0]  %s1, 384, %s30, [#allocation6], 128, 128, 8
    $region9: #{tpu_custom_call.1} parent=1 // pred_fallthru
      _
    // Predicated region
    $region10: #{tpu_custom_call.1} parent=1 // pred_check
      _
    $region11: #{tpu_custom_call.1} parent=1 // pred_check_branch
      %37 = sbr.rel (0) target = $region13
    $region12: #{tpu_custom_call.1} parent=1 // pred_region
      %s39 = ssub.s32 384, 384
      %40 = vsyncadd [#allocation6], %s39
      %s41 = sshll.u32 [#allocation7], 4
      %s42 = int_to_ptr.vmem [resolvable:$true] %s41
      %47 = dma.hbm_to_vmem [thread:$0]  %s2, 384, %s42, [#allocation6], 128, 128, 8
    $region13: #{tpu_custom_call.1} parent=1 // pred_fallthru
      _
    // Predicated region
    $region14: #{tpu_custom_call.1} parent=1 // pred_check
      _
    $region15: #{tpu_custom_call.1} parent=1 // pred_check_branch
      %49 = sbr.rel (0) target = $region17
    $region16: #{tpu_custom_call.1} parent=1 // pred_region
      %s51 = ssub.s32 384, 384
      %52 = vsyncadd [#allocation9], %s51
      %s53 = sshll.u32 [#allocation8], 4
      %s54 = int_to_ptr.vmem [resolvable:$true] %s53
      %59 = dma.hbm_to_vmem [thread:$0]  %s3, 384, %s54, [#allocation9], 128, 128, 8
    $region17: #{tpu_custom_call.1} parent=1 // pred_fallthru
      _
    // Predicated region
    $region18: #{tpu_custom_call.1} parent=1 // pred_check
      _
    $region19: #{tpu_custom_call.1} parent=1 // pred_check_branch
      %61 = sbr.rel (0) target = $region21
    $region20: #{tpu_custom_call.1} parent=1 // pred_region
      _
    $region21: #{tpu_custom_call.1} parent=1 // pred_fallthru
      _
    // Predicated region
    $region22: #{tpu_custom_call.1} parent=1 // pred_check
      _
    $region23: #{tpu_custom_call.1} parent=1 // pred_check_branch
      %63 = sbr.rel (0) target = $region25
    $region24: #{tpu_custom_call.1} parent=1 // pred_region
      %64 = dma.done [#allocation3], 512
    $region25: #{tpu_custom_call.1} parent=1 // pred_fallthru
      _
    // Predicated region
    $region26: #{tpu_custom_call.1} parent=1 // pred_check
      _
    $region27: #{tpu_custom_call.1} parent=1 // pred_check_branch
      %66 = sbr.rel (0) target = $region29
    $region28: #{tpu_custom_call.1} parent=1 // pred_region
      %67 = dma.done [#allocation6], 384
    $region29: #{tpu_custom_call.1} parent=1 // pred_fallthru
      _
    // Predicated region
    $region30: #{tpu_custom_call.1} parent=1 // pred_check
      _
    $region31: #{tpu_custom_call.1} parent=1 // pred_check_branch
      %69 = sbr.rel (0) target = $region33
    $region32: #{tpu_custom_call.1} parent=1 // pred_region
      %70 = dma.done [#allocation6], 384
    $region33: #{tpu_custom_call.1} parent=1 // pred_fallthru
      _
    // Predicated region
    $region34: #{tpu_custom_call.1} parent=1 // pred_check
      _
    $region35: #{tpu_custom_call.1} parent=1 // pred_check_branch
      %72 = sbr.rel (0) target = $region37
    $region36: #{tpu_custom_call.1} parent=1 // pred_region
      %73 = dma.done [#allocation9], 384
    $region37: #{tpu_custom_call.1} parent=1 // pred_fallthru
      _
    %v74 = vlaneseq
    %v75 = vand.u32 %v74, 127
    %v76 = vadd.s32 %v75, 128
    %v77 = vadd.s32 %v75, 256
    %v78 = vadd.s32 %v75, 384
    %v79 = vand.u32 %v75, 15
    %v80 = vand.u32 %v76, 15
    %v81 = vand.u32 %v77, 15
    %v82 = vand.u32 %v78, 15
    %v83 = vshra.s32 %v75, 4
    %v84 = vshra.s32 %v76, 4
    %v85 = vshra.s32 %v77, 4
    %v86 = vshra.s32 %v78, 4
    %v87 = vand.u32 %v83, 15
    %v88 = vand.u32 %v84, 15
    %v89 = vand.u32 %v85, 15
    %v90 = vand.u32 %v86, 15
    %vm91 = vcmp.ge.s32.totalorder %v87, 1
    %vm92 = vcmp.ge.s32.totalorder %v88, 1
    %vm93 = vcmp.ge.s32.totalorder %v89, 1
    %vm94 = vcmp.ge.s32.totalorder %v90, 1
    %v95 = vsel %vm91, 1, 0
    %v96 = vsel %vm92, 1, 0
    %v97 = vsel %vm93, 1, 0
    %v98 = vsel %vm94, 1, 0
    %v99 = vcvt.s32.f32 %v95
    %v100 = vcvt.s32.f32 %v96
    %v101 = vcvt.s32.f32 %v97
    %v102 = vcvt.s32.f32 %v98
    %vm103 = vcmp.le.s32.totalorder %v87, 14
    %vm104 = vcmp.le.s32.totalorder %v88, 14
    %vm105 = vcmp.le.s32.totalorder %v89, 14
    %vm106 = vcmp.le.s32.totalorder %v90, 14
    %v107 = vsel %vm103, 1, 0
    %v108 = vsel %vm104, 1, 0
    %v109 = vsel %vm105, 1, 0
    %v110 = vsel %vm106, 1, 0
    %v111 = vcvt.s32.f32 %v107
    %v112 = vcvt.s32.f32 %v108
    %v113 = vcvt.s32.f32 %v109
    %v114 = vcvt.s32.f32 %v110
    %vm115 = vcmp.ge.s32.totalorder %v79, 1
    %vm116 = vcmp.ge.s32.totalorder %v80, 1
    %vm117 = vcmp.ge.s32.totalorder %v81, 1
    %vm118 = vcmp.ge.s32.totalorder %v82, 1
    %v119 = vsel %vm115, 1, 0
    %v120 = vsel %vm116, 1, 0
    %v121 = vsel %vm117, 1, 0
    %v122 = vsel %vm118, 1, 0
    %v123 = vcvt.s32.f32 %v119
    %v124 = vcvt.s32.f32 %v120
    %v125 = vcvt.s32.f32 %v121
    %v126 = vcvt.s32.f32 %v122
    %vm127 = vcmp.le.s32.totalorder %v79, 14
    %vm128 = vcmp.le.s32.totalorder %v80, 14
    %vm129 = vcmp.le.s32.totalorder %v81, 14
    %vm130 = vcmp.le.s32.totalorder %v82, 14
    %v131 = vsel %vm127, 1, 0
    %v132 = vsel %vm128, 1, 0
    %v133 = vsel %vm129, 1, 0
    %v134 = vsel %vm130, 1, 0
    %v135 = vcvt.s32.f32 %v131
    %v136 = vcvt.s32.f32 %v132
    %v137 = vcvt.s32.f32 %v133
    %v138 = vcvt.s32.f32 %v134
    %v139 = vld [vmem:[#allocation2] sm:$0xff]
    %v140 = vld [vmem:[#allocation2 + $0x8] sm:$0xff]
    %v141 = vld [vmem:[#allocation2 + $0x10] sm:$0xff]
    %v142 = vld [vmem:[#allocation2 + $0x18] sm:$0xff]
    %v143 = vld [vmem:[#allocation5] sm:$0xff]
    %v144 = vld [vmem:[#allocation5 + $0x8] sm:$0xff]
    %v145 = vld [vmem:[#allocation5 + $0x10] sm:$0xff]
    %147 = vrot.lane.b32.xlu0 %v142, 16
    %v148 = vpop.permute.xlu0 %147
    %153 = vrot.lane.b32.xlu0 %v139, 16
    %v154 = vpop.permute.xlu0 %153
    %155 = vrot.lane.b32.xlu0 %v140, 16
    %v156 = vpop.permute.xlu0 %155
    %157 = vrot.lane.b32.xlu0 %v141, 16
    %v158 = vpop.permute.xlu0 %157
    %vm159 = vcmask 130048
    %v160 = vsel %vm159, %v154, %v156
    %v161 = vsel %vm159, %v156, %v158
    %v162 = vsel %vm159, %v158, %v148
    %v167 = vsel %vm159, %v148, %v154
    %v168 = vmul.f32 %v167, %v99
    %v169 = vmul.f32 %v160, %v100
    %v170 = vmul.f32 %v161, %v101
    %v171 = vmul.f32 %v162, %v102
    %172 = vrot.lane.b32.xlu0 %v139, 112
    %v173 = vpop.permute.xlu0 %172
    %174 = vrot.lane.b32.xlu0 %v140, 112
    %v175 = vpop.permute.xlu0 %174
    %176 = vrot.lane.b32.xlu0 %v141, 112
    %v177 = vpop.permute.xlu0 %176
    %178 = vrot.lane.b32.xlu0 %v142, 112
    %v179 = vpop.permute.xlu0 %178
    %vm180 = vcmask 916480
    %v181 = vsel %vm180, %v173, %v175
    %v182 = vsel %vm180, %v175, %v177
    %v183 = vsel %vm180, %v177, %v179
    %v189 = vsel %vm180, %v179, %v173
    %v190 = vmul.f32 %v181, %v111
    %v191 = vmul.f32 %v182, %v112
    %v192 = vmul.f32 %v183, %v113
    %v193 = vmul.f32 %v189, %v114
    %vm194 = vcmask 203776
    %v196 = vsel %vm194, %v143, 0
    %v199 = vsel %vm194, %v144, 0
    %v202 = vsel %vm194, %v145, 0
    %vm204 = vcmask 1040384
    %v206 = vsel %vm204, 1.0, 0
    %208 = vmatprep.subr.mxu0 0.0
    %209 = vmatpush1.msra.mxu0 0.0
    %210 = vmatprep.subr.mxu0 0.0
    %211 = vmatpush1.msra.mxu0 0.0
    %212 = vmatprep.subr.mxu0 0.0
    %213 = vmatpush1.msra.mxu0 0.0
    %214 = vmatprep.subr.mxu0 0.0
    %215 = vmatpush1.msra.mxu0 0.0
    %216 = vmatprep.subr.mxu0 0.0
    %217 = vmatpush1.msra.mxu0 0.0
    %218 = vmatprep.subr.mxu0 0.0
    %219 = vmatpush1.msra.mxu0 0.0
    %220 = vmatprep.subr.mxu0 0.0
    %221 = vmatpush1.msra.mxu0 0.0
    %222 = vmatprep.subr.mxu0 0.0
    %223 = vmatpush1.msra.mxu0 0.0
    %224 = vmatprep.subr.mxu0 0.0
    %225 = vmatpush1.msra.mxu0 0.0
    %226 = vmatprep.subr.mxu0 0.0
    %227 = vmatpush1.msra.mxu0 0.0
    %228 = vmatprep.subr.mxu0 0.0
    %229 = vmatpush1.msra.mxu0 0.0
    %230 = vmatprep.subr.mxu0 0.0
    %231 = vmatpush1.msra.mxu0 0.0
    %232 = vmatprep.subr.mxu0 %v206
    %233 = vmatpush1.msra.mxu0 %v206
    %234 = vmatprep.subr.mxu0 %v191
    %235 = vmatpush1.msra.mxu0 %v190
    %236 = vmatprep.subr.mxu0 %v140
    %237 = vmatpush1.msra.mxu0 %v139
    %238 = vmatprep.subr.mxu0 %v169
    %239 = vmatpush1.msra.mxu0 %v168
    %240 = vmatprep.subr.mxu0 0.0
    %241 = vmatpush2.msra.mxu0 0.0
    %242 = vmatprep.subr.mxu0 0.0
    %243 = vmatpush2.msra.mxu0 0.0
    %244 = vmatprep.subr.mxu0 0.0
    %245 = vmatpush2.msra.mxu0 0.0
    %246 = vmatprep.subr.mxu0 0.0
    %247 = vmatpush2.msra.mxu0 0.0
    %248 = vmatprep.subr.mxu0 0.0
    %249 = vmatpush2.msra.mxu0 0.0
    %250 = vmatprep.subr.mxu0 0.0
    %251 = vmatpush2.msra.mxu0 0.0
    %252 = vmatprep.subr.mxu0 0.0
    %253 = vmatpush2.msra.mxu0 0.0
    %254 = vmatprep.subr.mxu0 0.0
    %255 = vmatpush2.msra.mxu0 0.0
    %256 = vmatprep.subr.mxu0 0.0
    %257 = vmatpush2.msra.mxu0 0.0
    %258 = vmatprep.subr.mxu0 0.0
    %259 = vmatpush2.msra.mxu0 0.0
    %260 = vmatprep.subr.mxu0 0.0
    %261 = vmatpush2.msra.mxu0 0.0
    %262 = vmatprep.subr.mxu0 0.0
    %263 = vmatpush2.msra.mxu0 0.0
    %264 = vmatprep.subr.mxu0 0.0
    %265 = vmatpush2.msra.mxu0 0.0
    %266 = vmatprep.subr.mxu0 0.0
    %267 = vmatpush2.msra.mxu0 0.0
    %268 = vmatprep.subr.mxu0 0.0
    %269 = vmatpush2.msra.mxu0 0.0
    %270 = vmatprep.subr.mxu0 0.0
    %271 = vmatpush2.msra.mxu0 0.0
    %272 = vmatprep.mubr.f32.mxu0 0.0
    %273 = vmatmul.mubr.f32.gmra.mxu0 %v196
    %v274 = vpop.f32.mrf.mxu0
    %v275 = vadd.f32 0.0, %v274
    %v276 = vpop.f32.mrf.mxu0
    %v277 = vadd.f32 0.0, %v276
    %278 = vmatprep.mubr.f32.mxu0 0.0
    %279 = vmatmul.mubr.f32.gmra.mxu0 %v199
    %v280 = vpop.f32.mrf.mxu0
    %v281 = vadd.f32 0.0, %v280
    %v282 = vpop.f32.mrf.mxu0
    %v283 = vadd.f32 0.0, %v282
    %284 = vmatprep.mubr.f32.mxu0 0.0
    %285 = vmatmul.mubr.f32.gmra.mxu0 %v202
    %v286 = vpop.f32.mrf.mxu0
    %v287 = vadd.f32 0.0, %v286
    %v288 = vpop.f32.mrf.mxu0
    %v289 = vadd.f32 0.0, %v288
    %290 = vdwg.mxu0
    %291 = vmatprep.subr.mxu0 0.0
    %292 = vmatpush1.msra.mxu0 0.0
    %293 = vmatprep.subr.mxu0 0.0
    %294 = vmatpush1.msra.mxu0 0.0
    %295 = vmatprep.subr.mxu0 0.0
    %296 = vmatpush1.msra.mxu0 0.0
    %297 = vmatprep.subr.mxu0 0.0
    %298 = vmatpush1.msra.mxu0 0.0
    %299 = vmatprep.subr.mxu0 0.0
    %300 = vmatpush1.msra.mxu0 0.0
    %301 = vmatprep.subr.mxu0 0.0
    %302 = vmatpush1.msra.mxu0 0.0
    %303 = vmatprep.subr.mxu0 0.0
    %304 = vmatpush1.msra.mxu0 0.0
    %305 = vmatprep.subr.mxu0 0.0
    %306 = vmatpush1.msra.mxu0 0.0
    %307 = vmatprep.subr.mxu0 0.0
    %308 = vmatpush1.msra.mxu0 0.0
    %309 = vmatprep.subr.mxu0 0.0
    %310 = vmatpush1.msra.mxu0 0.0
    %311 = vmatprep.subr.mxu0 0.0
    %312 = vmatpush1.msra.mxu0 0.0
    %313 = vmatprep.subr.mxu0 0.0
    %314 = vmatpush1.msra.mxu0 0.0
    %315 = vmatprep.subr.mxu0 %v206
    %316 = vmatpush1.msra.mxu0 %v206
    %317 = vmatprep.subr.mxu0 %v193
    %318 = vmatpush1.msra.mxu0 %v192
    %319 = vmatprep.subr.mxu0 %v142
    %320 = vmatpush1.msra.mxu0 %v141
    %321 = vmatprep.subr.mxu0 %v171
    %322 = vmatpush1.msra.mxu0 %v170
    %323 = vmatprep.subr.mxu0 0.0
    %324 = vmatpush2.msra.mxu0 0.0
    %325 = vmatprep.subr.mxu0 0.0
    %326 = vmatpush2.msra.mxu0 0.0
    %327 = vmatprep.subr.mxu0 0.0
    %328 = vmatpush2.msra.mxu0 0.0
    %329 = vmatprep.subr.mxu0 0.0
    %330 = vmatpush2.msra.mxu0 0.0
    %331 = vmatprep.subr.mxu0 0.0
    %332 = vmatpush2.msra.mxu0 0.0
    %333 = vmatprep.subr.mxu0 0.0
    %334 = vmatpush2.msra.mxu0 0.0
    %335 = vmatprep.subr.mxu0 0.0
    %336 = vmatpush2.msra.mxu0 0.0
    %337 = vmatprep.subr.mxu0 0.0
    %338 = vmatpush2.msra.mxu0 0.0
    %339 = vmatprep.subr.mxu0 0.0
    %340 = vmatpush2.msra.mxu0 0.0
    %341 = vmatprep.subr.mxu0 0.0
    %342 = vmatpush2.msra.mxu0 0.0
    %343 = vmatprep.subr.mxu0 0.0
    %344 = vmatpush2.msra.mxu0 0.0
    %345 = vmatprep.subr.mxu0 0.0
    %346 = vmatpush2.msra.mxu0 0.0
    %347 = vmatprep.subr.mxu0 0.0
    %348 = vmatpush2.msra.mxu0 0.0
    %349 = vmatprep.subr.mxu0 0.0
    %350 = vmatpush2.msra.mxu0 0.0
    %351 = vmatprep.subr.mxu0 0.0
    %352 = vmatpush2.msra.mxu0 0.0
    %353 = vmatprep.subr.mxu0 0.0
    %354 = vmatpush2.msra.mxu0 0.0
    %355 = vmatprep.mubr.f32.mxu0 0.0
    %356 = vmatmul.mubr.f32.gmra.mxu0 %v196
    %v357 = vpop.f32.mrf.mxu0
    %v358 = vadd.f32 0.0, %v357
    %v359 = vpop.f32.mrf.mxu0
    %v360 = vadd.f32 0.0, %v359
    %361 = vmatprep.mubr.f32.mxu0 0.0
    %362 = vmatmul.mubr.f32.gmra.mxu0 %v199
    %v363 = vpop.f32.mrf.mxu0
    %v364 = vadd.f32 0.0, %v363
    %v365 = vpop.f32.mrf.mxu0
    %v366 = vadd.f32 0.0, %v365
    %367 = vmatprep.mubr.f32.mxu0 0.0
    %368 = vmatmul.mubr.f32.gmra.mxu0 %v202
    %v369 = vpop.f32.mrf.mxu0
    %v370 = vadd.f32 0.0, %v369
    %v371 = vpop.f32.mrf.mxu0
    %v372 = vadd.f32 0.0, %v371
    %373 = vdwg.mxu0
    %375 = vrot.lane.b32.xlu0 %v360, 1
    %v376 = vpop.permute.xlu0 %375
    %381 = vrot.lane.b32.xlu0 %v275, 1
    %v382 = vpop.permute.xlu0 %381
    %383 = vrot.lane.b32.xlu0 %v277, 1
    %v384 = vpop.permute.xlu0 %383
    %385 = vrot.lane.b32.xlu0 %v358, 1
    %v386 = vpop.permute.xlu0 %385
    %vm387 = vcmask 7168
    %v388 = vsel %vm387, %v382, %v384
    %v389 = vsel %vm387, %v384, %v386
    %v390 = vsel %vm387, %v386, %v376
    %v395 = vsel %vm387, %v376, %v382
    %v396 = vmul.f32 %v395, %v123
    %v397 = vmul.f32 %v388, %v124
    %v398 = vmul.f32 %v389, %v125
    %v399 = vmul.f32 %v390, %v126
    %404 = vrot.lane.b32.xlu0 %v287, 127
    %v405 = vpop.permute.xlu0 %404
    %406 = vrot.lane.b32.xlu0 %v289, 127
    %v407 = vpop.permute.xlu0 %406
    %408 = vrot.lane.b32.xlu0 %v370, 127
    %v409 = vpop.permute.xlu0 %408
    %410 = vrot.lane.b32.xlu0 %v372, 127
    %v411 = vpop.permute.xlu0 %410
    %vm412 = vcmask 1039360
    %v413 = vsel %vm412, %v405, %v407
    %v414 = vsel %vm412, %v407, %v409
    %v415 = vsel %vm412, %v409, %v411
    %v421 = vsel %vm412, %v411, %v405
    %v422 = vmul.f32 %v413, %v135
    %v423 = vmul.f32 %v414, %v136
    %v424 = vmul.f32 %v415, %v137
    %v425 = vmul.f32 %v421, %v138
    %v426 = vadd.f32 %v281, %v396
    %v427 = vadd.f32 %v283, %v397
    %v428 = vadd.f32 %v364, %v398
    %v429 = vadd.f32 %v366, %v399
    %v430 = vadd.f32 %v426, %v422
    %v431 = vadd.f32 %v427, %v423
    %v432 = vadd.f32 %v428, %v424
    %v433 = vadd.f32 %v429, %v425
    %v434 = vld [vmem:[#allocation7] sm:$0xff]
    %v435 = vld [vmem:[#allocation7 + $0x8] sm:$0xff]
    %v436 = vld [vmem:[#allocation7 + $0x10] sm:$0xff]
    %438 = vrot.lane.b32.xlu0 %v433, 16
    %v439 = vpop.permute.xlu0 %438
    %444 = vrot.lane.b32.xlu0 %v430, 16
    %v445 = vpop.permute.xlu0 %444
    %446 = vrot.lane.b32.xlu0 %v431, 16
    %v447 = vpop.permute.xlu0 %446
    %448 = vrot.lane.b32.xlu0 %v432, 16
    %v449 = vpop.permute.xlu0 %448
    %v450 = vsel %vm159, %v445, %v447
    %v451 = vsel %vm159, %v447, %v449
    %v452 = vsel %vm159, %v449, %v439
    %v457 = vsel %vm159, %v439, %v445
    %v458 = vmul.f32 %v457, %v99
    %v459 = vmul.f32 %v450, %v100
    %v460 = vmul.f32 %v451, %v101
    %v461 = vmul.f32 %v452, %v102
    %462 = vrot.lane.b32.xlu0 %v430, 112
    %v463 = vpop.permute.xlu0 %462
    %464 = vrot.lane.b32.xlu0 %v431, 112
    %v465 = vpop.permute.xlu0 %464
    %466 = vrot.lane.b32.xlu0 %v432, 112
    %v467 = vpop.permute.xlu0 %466
    %468 = vrot.lane.b32.xlu0 %v433, 112
    %v469 = vpop.permute.xlu0 %468
    %v470 = vsel %vm180, %v463, %v465
    %v471 = vsel %vm180, %v465, %v467
    %v472 = vsel %vm180, %v467, %v469
    %v478 = vsel %vm180, %v469, %v463
    %v479 = vmul.f32 %v470, %v111
    %v480 = vmul.f32 %v471, %v112
    %v481 = vmul.f32 %v472, %v113
    %v482 = vmul.f32 %v478, %v114
    %v484 = vsel %vm194, %v434, 0
    %v487 = vsel %vm194, %v435, 0
    %v490 = vsel %vm194, %v436, 0
    %492 = vmatprep.subr.mxu0 0.0
    %493 = vmatpush1.msra.mxu0 0.0
    %494 = vmatprep.subr.mxu0 0.0
    %495 = vmatpush1.msra.mxu0 0.0
    %496 = vmatprep.subr.mxu0 0.0
    %497 = vmatpush1.msra.mxu0 0.0
    %498 = vmatprep.subr.mxu0 0.0
    %499 = vmatpush1.msra.mxu0 0.0
    %500 = vmatprep.subr.mxu0 0.0
    %501 = vmatpush1.msra.mxu0 0.0
    %502 = vmatprep.subr.mxu0 0.0
    %503 = vmatpush1.msra.mxu0 0.0
    %504 = vmatprep.subr.mxu0 0.0
    %505 = vmatpush1.msra.mxu0 0.0
    %506 = vmatprep.subr.mxu0 0.0
    %507 = vmatpush1.msra.mxu0 0.0
    %508 = vmatprep.subr.mxu0 0.0
    %509 = vmatpush1.msra.mxu0 0.0
    %510 = vmatprep.subr.mxu0 0.0
    %511 = vmatpush1.msra.mxu0 0.0
    %512 = vmatprep.subr.mxu0 0.0
    %513 = vmatpush1.msra.mxu0 0.0
    %514 = vmatprep.subr.mxu0 0.0
    %515 = vmatpush1.msra.mxu0 0.0
    %516 = vmatprep.subr.mxu0 %v206
    %517 = vmatpush1.msra.mxu0 %v206
    %518 = vmatprep.subr.mxu0 %v480
    %519 = vmatpush1.msra.mxu0 %v479
    %520 = vmatprep.subr.mxu0 %v431
    %521 = vmatpush1.msra.mxu0 %v430
    %522 = vmatprep.subr.mxu0 %v459
    %523 = vmatpush1.msra.mxu0 %v458
    %524 = vmatprep.subr.mxu0 0.0
    %525 = vmatpush2.msra.mxu0 0.0
    %526 = vmatprep.subr.mxu0 0.0
    %527 = vmatpush2.msra.mxu0 0.0
    %528 = vmatprep.subr.mxu0 0.0
    %529 = vmatpush2.msra.mxu0 0.0
    %530 = vmatprep.subr.mxu0 0.0
    %531 = vmatpush2.msra.mxu0 0.0
    %532 = vmatprep.subr.mxu0 0.0
    %533 = vmatpush2.msra.mxu0 0.0
    %534 = vmatprep.subr.mxu0 0.0
    %535 = vmatpush2.msra.mxu0 0.0
    %536 = vmatprep.subr.mxu0 0.0
    %537 = vmatpush2.msra.mxu0 0.0
    %538 = vmatprep.subr.mxu0 0.0
    %539 = vmatpush2.msra.mxu0 0.0
    %540 = vmatprep.subr.mxu0 0.0
    %541 = vmatpush2.msra.mxu0 0.0
    %542 = vmatprep.subr.mxu0 0.0
    %543 = vmatpush2.msra.mxu0 0.0
    %544 = vmatprep.subr.mxu0 0.0
    %545 = vmatpush2.msra.mxu0 0.0
    %546 = vmatprep.subr.mxu0 0.0
    %547 = vmatpush2.msra.mxu0 0.0
    %548 = vmatprep.subr.mxu0 0.0
    %549 = vmatpush2.msra.mxu0 0.0
    %550 = vmatprep.subr.mxu0 0.0
    %551 = vmatpush2.msra.mxu0 0.0
    %552 = vmatprep.subr.mxu0 0.0
    %553 = vmatpush2.msra.mxu0 0.0
    %554 = vmatprep.subr.mxu0 0.0
    %555 = vmatpush2.msra.mxu0 0.0
    %556 = vmatprep.mubr.f32.mxu0 0.0
    %557 = vmatmul.mubr.f32.gmra.mxu0 %v484
    %v558 = vpop.f32.mrf.mxu0
    %v559 = vadd.f32 0.0, %v558
    %v560 = vpop.f32.mrf.mxu0
    %v561 = vadd.f32 0.0, %v560
    %562 = vmatprep.mubr.f32.mxu0 0.0
    %563 = vmatmul.mubr.f32.gmra.mxu0 %v487
    %v564 = vpop.f32.mrf.mxu0
    %v565 = vadd.f32 0.0, %v564
    %v566 = vpop.f32.mrf.mxu0
    %v567 = vadd.f32 0.0, %v566
    %568 = vmatprep.mubr.f32.mxu0 0.0
    %569 = vmatmul.mubr.f32.gmra.mxu0 %v490
    %v570 = vpop.f32.mrf.mxu0
    %v571 = vadd.f32 0.0, %v570
    %v572 = vpop.f32.mrf.mxu0
    %v573 = vadd.f32 0.0, %v572
    %574 = vdwg.mxu0
    %575 = vmatprep.subr.mxu0 0.0
    %576 = vmatpush1.msra.mxu0 0.0
    %577 = vmatprep.subr.mxu0 0.0
    %578 = vmatpush1.msra.mxu0 0.0
    %579 = vmatprep.subr.mxu0 0.0
    %580 = vmatpush1.msra.mxu0 0.0
    %581 = vmatprep.subr.mxu0 0.0
    %582 = vmatpush1.msra.mxu0 0.0
    %583 = vmatprep.subr.mxu0 0.0
    %584 = vmatpush1.msra.mxu0 0.0
    %585 = vmatprep.subr.mxu0 0.0
    %586 = vmatpush1.msra.mxu0 0.0
    %587 = vmatprep.subr.mxu0 0.0
    %588 = vmatpush1.msra.mxu0 0.0
    %589 = vmatprep.subr.mxu0 0.0
    %590 = vmatpush1.msra.mxu0 0.0
    %591 = vmatprep.subr.mxu0 0.0
    %592 = vmatpush1.msra.mxu0 0.0
    %593 = vmatprep.subr.mxu0 0.0
    %594 = vmatpush1.msra.mxu0 0.0
    %595 = vmatprep.subr.mxu0 0.0
    %596 = vmatpush1.msra.mxu0 0.0
    %597 = vmatprep.subr.mxu0 0.0
    %598 = vmatpush1.msra.mxu0 0.0
    %599 = vmatprep.subr.mxu0 %v206
    %600 = vmatpush1.msra.mxu0 %v206
    %601 = vmatprep.subr.mxu0 %v482
    %602 = vmatpush1.msra.mxu0 %v481
    %603 = vmatprep.subr.mxu0 %v433
    %604 = vmatpush1.msra.mxu0 %v432
    %605 = vmatprep.subr.mxu0 %v461
    %606 = vmatpush1.msra.mxu0 %v460
    %607 = vmatprep.subr.mxu0 0.0
    %608 = vmatpush2.msra.mxu0 0.0
    %609 = vmatprep.subr.mxu0 0.0
    %610 = vmatpush2.msra.mxu0 0.0
    %611 = vmatprep.subr.mxu0 0.0
    %612 = vmatpush2.msra.mxu0 0.0
    %613 = vmatprep.subr.mxu0 0.0
    %614 = vmatpush2.msra.mxu0 0.0
    %615 = vmatprep.subr.mxu0 0.0
    %616 = vmatpush2.msra.mxu0 0.0
    %617 = vmatprep.subr.mxu0 0.0
    %618 = vmatpush2.msra.mxu0 0.0
    %619 = vmatprep.subr.mxu0 0.0
    %620 = vmatpush2.msra.mxu0 0.0
    %621 = vmatprep.subr.mxu0 0.0
    %622 = vmatpush2.msra.mxu0 0.0
    %623 = vmatprep.subr.mxu0 0.0
    %624 = vmatpush2.msra.mxu0 0.0
    %625 = vmatprep.subr.mxu0 0.0
    %626 = vmatpush2.msra.mxu0 0.0
    %627 = vmatprep.subr.mxu0 0.0
    %628 = vmatpush2.msra.mxu0 0.0
    %629 = vmatprep.subr.mxu0 0.0
    %630 = vmatpush2.msra.mxu0 0.0
    %631 = vmatprep.subr.mxu0 0.0
    %632 = vmatpush2.msra.mxu0 0.0
    %633 = vmatprep.subr.mxu0 0.0
    %634 = vmatpush2.msra.mxu0 0.0
    %635 = vmatprep.subr.mxu0 0.0
    %636 = vmatpush2.msra.mxu0 0.0
    %637 = vmatprep.subr.mxu0 0.0
    %638 = vmatpush2.msra.mxu0 0.0
    %639 = vmatprep.mubr.f32.mxu0 0.0
    %640 = vmatmul.mubr.f32.gmra.mxu0 %v484
    %v641 = vpop.f32.mrf.mxu0
    %v642 = vadd.f32 0.0, %v641
    %v643 = vpop.f32.mrf.mxu0
    %v644 = vadd.f32 0.0, %v643
    %645 = vmatprep.mubr.f32.mxu0 0.0
    %646 = vmatmul.mubr.f32.gmra.mxu0 %v487
    %v647 = vpop.f32.mrf.mxu0
    %v648 = vadd.f32 0.0, %v647
    %v649 = vpop.f32.mrf.mxu0
    %v650 = vadd.f32 0.0, %v649
    %651 = vmatprep.mubr.f32.mxu0 0.0
    %652 = vmatmul.mubr.f32.gmra.mxu0 %v490
    %v653 = vpop.f32.mrf.mxu0
    %v654 = vadd.f32 0.0, %v653
    %v655 = vpop.f32.mrf.mxu0
    %v656 = vadd.f32 0.0, %v655
    %657 = vdwg.mxu0
    %659 = vrot.lane.b32.xlu0 %v644, 1
    %v660 = vpop.permute.xlu0 %659
    %665 = vrot.lane.b32.xlu0 %v559, 1
    %v666 = vpop.permute.xlu0 %665
    %667 = vrot.lane.b32.xlu0 %v561, 1
    %v668 = vpop.permute.xlu0 %667
    %669 = vrot.lane.b32.xlu0 %v642, 1
    %v670 = vpop.permute.xlu0 %669
    %v671 = vsel %vm387, %v666, %v668
    %v672 = vsel %vm387, %v668, %v670
    %v673 = vsel %vm387, %v670, %v660
    %v678 = vsel %vm387, %v660, %v666
    %v679 = vmul.f32 %v678, %v123
    %v680 = vmul.f32 %v671, %v124
    %v681 = vmul.f32 %v672, %v125
    %v682 = vmul.f32 %v673, %v126
    %687 = vrot.lane.b32.xlu0 %v571, 127
    %v688 = vpop.permute.xlu0 %687
    %689 = vrot.lane.b32.xlu0 %v573, 127
    %v690 = vpop.permute.xlu0 %689
    %691 = vrot.lane.b32.xlu0 %v654, 127
    %v692 = vpop.permute.xlu0 %691
    %693 = vrot.lane.b32.xlu0 %v656, 127
    %v694 = vpop.permute.xlu0 %693
    %v695 = vsel %vm412, %v688, %v690
    %v696 = vsel %vm412, %v690, %v692
    %v697 = vsel %vm412, %v692, %v694
    %v703 = vsel %vm412, %v694, %v688
    %v704 = vmul.f32 %v695, %v135
    %v705 = vmul.f32 %v696, %v136
    %v706 = vmul.f32 %v697, %v137
    %v707 = vmul.f32 %v703, %v138
    %v708 = vadd.f32 %v565, %v679
    %v709 = vadd.f32 %v567, %v680
    %v710 = vadd.f32 %v648, %v681
    %v711 = vadd.f32 %v650, %v682
    %v712 = vadd.f32 %v708, %v704
    %v713 = vadd.f32 %v709, %v705
    %v714 = vadd.f32 %v710, %v706
    %v715 = vadd.f32 %v711, %v707
    %vm716 = vcmp.ge.f32.partialorder %v712, 0.0
    %vm717 = vcmp.ge.f32.partialorder %v713, 0.0
    %vm718 = vcmp.ge.f32.partialorder %v714, 0.0
    %vm719 = vcmp.ge.f32.partialorder %v715, 0.0
    %v720 = vmul.f32 %v712, 0.2
    %v721 = vmul.f32 %v713, 0.2
    %v722 = vmul.f32 %v714, 0.2
    %v723 = vmul.f32 %v715, 0.2
    %v724 = vsel %vm716, %v712, %v720
    %v725 = vsel %vm717, %v713, %v721
    %v726 = vsel %vm718, %v714, %v722
    %v727 = vsel %vm719, %v715, %v723
    %v728 = vld [vmem:[%s4] sm:$0xff]
    %v729 = vlaneseq
    %v730 = vshrl.u32 %v729, 7
    %vm731 = vcmp.lt.s32.totalorder %v730, 4
    %v732 = vadd.f32 %v724, %v725
    %733 = vadd.xlane.f32.xlu0 %v732
    %v734 = vpop.xlane.xlu0 %733
    %v735 = vmul.f32 %v734, 0.00390625
    %v736 = vmul.f32 %v724, %v724
    %v737 = vmul.f32 %v725, %v725
    %v738 = vadd.f32 %v736, %v737
    %739 = vadd.xlane.f32.xlu0 %v738
    %v740 = vpop.xlane.xlu0 %739
    %v741 = vmul.f32 %v740, 0.00390625
    %v742 = vmul.f32 %v735, %v735
    %v743 = vsub.f32 %v741, %v742
    %v744 = vadd.f32 %v743, 1e-05
    %v745 = vrsqrt.pop %v744
    %v746 = vmul.f32 %v728, %v745
    %v747 = vsel %vm731, %v746, 1.0
    %v748 = vmul.f32 %v735, %v747
    %750 = vrot.lane.b32.xlu0 %v748, 1
    %v751 = vpop.permute.xlu0 %750
    %v753 = vsub.f32 %v728, %v751
    %v754 = vsel %vm731, %v753, 0.0
    %756 = vset.pattern.permute.xlu0 0
    %757 = vperm.xlu0 %756, %v747
    %v758 = vpop.permute.xlu0 %757
    %v760 = vmul.f32 %v724, %v758
    %v761 = vmul.f32 %v725, %v758
    %763 = vset.pattern.permute.xlu0 1
    %764 = vperm.xlu0 %763, %v754
    %v765 = vpop.permute.xlu0 %764
    %v767 = vadd.f32 %v760, %v765
    %v768 = vadd.f32 %v761, %v765
    %v769 = vadd.f32 %v726, %v727
    %770 = vadd.xlane.f32.xlu0 %v769
    %v771 = vpop.xlane.xlu0 %770
    %v772 = vmul.f32 %v771, 0.00390625
    %v773 = vmul.f32 %v726, %v726
    %v774 = vmul.f32 %v727, %v727
    %v775 = vadd.f32 %v773, %v774
    %776 = vadd.xlane.f32.xlu0 %v775
    %v777 = vpop.xlane.xlu0 %776
    %v778 = vmul.f32 %v777, 0.00390625
    %v779 = vmul.f32 %v772, %v772
    %v780 = vsub.f32 %v778, %v779
    %v781 = vadd.f32 %v780, 1e-05
    %v782 = vrsqrt.pop %v781
    %v783 = vmul.f32 %v728, %v782
    %v784 = vsel %vm731, %v783, 1.0
    %v785 = vmul.f32 %v772, %v784
    %787 = vrot.lane.b32.xlu0 %v785, 1
    %v788 = vpop.permute.xlu0 %787
    %v790 = vsub.f32 %v728, %v788
    %v791 = vsel %vm731, %v790, 0.0
    %793 = vset.pattern.permute.xlu0 0
    %794 = vperm.xlu0 %793, %v784
    %v795 = vpop.permute.xlu0 %794
    %v797 = vmul.f32 %v726, %v795
    %v798 = vmul.f32 %v727, %v795
    %800 = vset.pattern.permute.xlu0 1
    %801 = vperm.xlu0 %800, %v791
    %v802 = vpop.permute.xlu0 %801
    %v804 = vadd.f32 %v797, %v802
    %v805 = vadd.f32 %v798, %v802
    %v806 = vld [vmem:[#allocation8] sm:$0xff]
    %v807 = vld [vmem:[#allocation8 + $0x8] sm:$0xff]
    %v808 = vld [vmem:[#allocation8 + $0x10] sm:$0xff]
    %810 = vrot.lane.b32.xlu0 %v805, 16
    %v811 = vpop.permute.xlu0 %810
    %816 = vrot.lane.b32.xlu0 %v767, 16
    %v817 = vpop.permute.xlu0 %816
    %818 = vrot.lane.b32.xlu0 %v768, 16
    %v819 = vpop.permute.xlu0 %818
    %820 = vrot.lane.b32.xlu0 %v804, 16
    %v821 = vpop.permute.xlu0 %820
    %v822 = vsel %vm159, %v817, %v819
    %v823 = vsel %vm159, %v819, %v821
    %v824 = vsel %vm159, %v821, %v811
    %v829 = vsel %vm159, %v811, %v817
    %v830 = vmul.f32 %v829, %v99
    %v831 = vmul.f32 %v822, %v100
    %v832 = vmul.f32 %v823, %v101
    %v833 = vmul.f32 %v824, %v102
    %834 = vrot.lane.b32.xlu0 %v767, 112
    %v835 = vpop.permute.xlu0 %834
    %836 = vrot.lane.b32.xlu0 %v768, 112
    %v837 = vpop.permute.xlu0 %836
    %838 = vrot.lane.b32.xlu0 %v804, 112
    %v839 = vpop.permute.xlu0 %838
    %840 = vrot.lane.b32.xlu0 %v805, 112
    %v841 = vpop.permute.xlu0 %840
    %v842 = vsel %vm180, %v835, %v837
    %v843 = vsel %vm180, %v837, %v839
    %v844 = vsel %vm180, %v839, %v841
    %v850 = vsel %vm180, %v841, %v835
    %v851 = vmul.f32 %v842, %v111
    %v852 = vmul.f32 %v843, %v112
    %v853 = vmul.f32 %v844, %v113
    %v854 = vmul.f32 %v850, %v114
    %v856 = vsel %vm194, %v806, 0
    %v859 = vsel %vm194, %v807, 0
    %v862 = vsel %vm194, %v808, 0
    %864 = vmatprep.subr.mxu0 0.0
    %865 = vmatpush1.msra.mxu0 0.0
    %866 = vmatprep.subr.mxu0 0.0
    %867 = vmatpush1.msra.mxu0 0.0
    %868 = vmatprep.subr.mxu0 0.0
    %869 = vmatpush1.msra.mxu0 0.0
    %870 = vmatprep.subr.mxu0 0.0
    %871 = vmatpush1.msra.mxu0 0.0
    %872 = vmatprep.subr.mxu0 0.0
    %873 = vmatpush1.msra.mxu0 0.0
    %874 = vmatprep.subr.mxu0 0.0
    %875 = vmatpush1.msra.mxu0 0.0
    %876 = vmatprep.subr.mxu0 0.0
    %877 = vmatpush1.msra.mxu0 0.0
    %878 = vmatprep.subr.mxu0 0.0
    %879 = vmatpush1.msra.mxu0 0.0
    %880 = vmatprep.subr.mxu0 0.0
    %881 = vmatpush1.msra.mxu0 0.0
    %882 = vmatprep.subr.mxu0 0.0
    %883 = vmatpush1.msra.mxu0 0.0
    %884 = vmatprep.subr.mxu0 0.0
    %885 = vmatpush1.msra.mxu0 0.0
    %886 = vmatprep.subr.mxu0 0.0
    %887 = vmatpush1.msra.mxu0 0.0
    %888 = vmatprep.subr.mxu0 %v206
    %889 = vmatpush1.msra.mxu0 %v206
    %890 = vmatprep.subr.mxu0 %v852
    %891 = vmatpush1.msra.mxu0 %v851
    %892 = vmatprep.subr.mxu0 %v768
    %893 = vmatpush1.msra.mxu0 %v767
    %894 = vmatprep.subr.mxu0 %v831
    %895 = vmatpush1.msra.mxu0 %v830
    %896 = vmatprep.subr.mxu0 0.0
    %897 = vmatpush2.msra.mxu0 0.0
    %898 = vmatprep.subr.mxu0 0.0
    %899 = vmatpush2.msra.mxu0 0.0
    %900 = vmatprep.subr.mxu0 0.0
    %901 = vmatpush2.msra.mxu0 0.0
    %902 = vmatprep.subr.mxu0 0.0
    %903 = vmatpush2.msra.mxu0 0.0
    %904 = vmatprep.subr.mxu0 0.0
    %905 = vmatpush2.msra.mxu0 0.0
    %906 = vmatprep.subr.mxu0 0.0
    %907 = vmatpush2.msra.mxu0 0.0
    %908 = vmatprep.subr.mxu0 0.0
    %909 = vmatpush2.msra.mxu0 0.0
    %910 = vmatprep.subr.mxu0 0.0
    %911 = vmatpush2.msra.mxu0 0.0
    %912 = vmatprep.subr.mxu0 0.0
    %913 = vmatpush2.msra.mxu0 0.0
    %914 = vmatprep.subr.mxu0 0.0
    %915 = vmatpush2.msra.mxu0 0.0
    %916 = vmatprep.subr.mxu0 0.0
    %917 = vmatpush2.msra.mxu0 0.0
    %918 = vmatprep.subr.mxu0 0.0
    %919 = vmatpush2.msra.mxu0 0.0
    %920 = vmatprep.subr.mxu0 0.0
    %921 = vmatpush2.msra.mxu0 0.0
    %922 = vmatprep.subr.mxu0 0.0
    %923 = vmatpush2.msra.mxu0 0.0
    %924 = vmatprep.subr.mxu0 0.0
    %925 = vmatpush2.msra.mxu0 0.0
    %926 = vmatprep.subr.mxu0 0.0
    %927 = vmatpush2.msra.mxu0 0.0
    %928 = vmatprep.mubr.f32.mxu0 0.0
    %929 = vmatmul.mubr.f32.gmra.mxu0 %v856
    %v930 = vpop.f32.mrf.mxu0
    %v931 = vadd.f32 0.0, %v930
    %v932 = vpop.f32.mrf.mxu0
    %v933 = vadd.f32 0.0, %v932
    %934 = vmatprep.mubr.f32.mxu0 0.0
    %935 = vmatmul.mubr.f32.gmra.mxu0 %v859
    %v936 = vpop.f32.mrf.mxu0
    %v937 = vadd.f32 0.0, %v936
    %v938 = vpop.f32.mrf.mxu0
    %v939 = vadd.f32 0.0, %v938
    %940 = vmatprep.mubr.f32.mxu0 0.0
    %941 = vmatmul.mubr.f32.gmra.mxu0 %v862
    %v942 = vpop.f32.mrf.mxu0
    %v943 = vadd.f32 0.0, %v942
    %v944 = vpop.f32.mrf.mxu0
    %v945 = vadd.f32 0.0, %v944
    %946 = vdwg.mxu0
    %947 = vmatprep.subr.mxu0 0.0
    %948 = vmatpush1.msra.mxu0 0.0
    %949 = vmatprep.subr.mxu0 0.0
    %950 = vmatpush1.msra.mxu0 0.0
    %951 = vmatprep.subr.mxu0 0.0
    %952 = vmatpush1.msra.mxu0 0.0
    %953 = vmatprep.subr.mxu0 0.0
    %954 = vmatpush1.msra.mxu0 0.0
    %955 = vmatprep.subr.mxu0 0.0
    %956 = vmatpush1.msra.mxu0 0.0
    %957 = vmatprep.subr.mxu0 0.0
    %958 = vmatpush1.msra.mxu0 0.0
    %959 = vmatprep.subr.mxu0 0.0
    %960 = vmatpush1.msra.mxu0 0.0
    %961 = vmatprep.subr.mxu0 0.0
    %962 = vmatpush1.msra.mxu0 0.0
    %963 = vmatprep.subr.mxu0 0.0
    %964 = vmatpush1.msra.mxu0 0.0
    %965 = vmatprep.subr.mxu0 0.0
    %966 = vmatpush1.msra.mxu0 0.0
    %967 = vmatprep.subr.mxu0 0.0
    %968 = vmatpush1.msra.mxu0 0.0
    %969 = vmatprep.subr.mxu0 0.0
    %970 = vmatpush1.msra.mxu0 0.0
    %971 = vmatprep.subr.mxu0 %v206
    %972 = vmatpush1.msra.mxu0 %v206
    %973 = vmatprep.subr.mxu0 %v854
    %974 = vmatpush1.msra.mxu0 %v853
    %975 = vmatprep.subr.mxu0 %v805
    %976 = vmatpush1.msra.mxu0 %v804
    %977 = vmatprep.subr.mxu0 %v833
    %978 = vmatpush1.msra.mxu0 %v832
    %979 = vmatprep.subr.mxu0 0.0
    %980 = vmatpush2.msra.mxu0 0.0
    %981 = vmatprep.subr.mxu0 0.0
    %982 = vmatpush2.msra.mxu0 0.0
    %983 = vmatprep.subr.mxu0 0.0
    %984 = vmatpush2.msra.mxu0 0.0
    %985 = vmatprep.subr.mxu0 0.0
    %986 = vmatpush2.msra.mxu0 0.0
    %987 = vmatprep.subr.mxu0 0.0
    %988 = vmatpush2.msra.mxu0 0.0
    %989 = vmatprep.subr.mxu0 0.0
    %990 = vmatpush2.msra.mxu0 0.0
    %991 = vmatprep.subr.mxu0 0.0
    %992 = vmatpush2.msra.mxu0 0.0
    %993 = vmatprep.subr.mxu0 0.0
    %994 = vmatpush2.msra.mxu0 0.0
    %995 = vmatprep.subr.mxu0 0.0
    %996 = vmatpush2.msra.mxu0 0.0
    %997 = vmatprep.subr.mxu0 0.0
    %998 = vmatpush2.msra.mxu0 0.0
    %999 = vmatprep.subr.mxu0 0.0
    %1000 = vmatpush2.msra.mxu0 0.0
    %1001 = vmatprep.subr.mxu0 0.0
    %1002 = vmatpush2.msra.mxu0 0.0
    %1003 = vmatprep.subr.mxu0 0.0
    %1004 = vmatpush2.msra.mxu0 0.0
    %1005 = vmatprep.subr.mxu0 0.0
    %1006 = vmatpush2.msra.mxu0 0.0
    %1007 = vmatprep.subr.mxu0 0.0
    %1008 = vmatpush2.msra.mxu0 0.0
    %1009 = vmatprep.subr.mxu0 0.0
    %1010 = vmatpush2.msra.mxu0 0.0
    %1011 = vmatprep.mubr.f32.mxu0 0.0
    %1012 = vmatmul.mubr.f32.gmra.mxu0 %v856
    %v1013 = vpop.f32.mrf.mxu0
    %v1014 = vadd.f32 0.0, %v1013
    %v1015 = vpop.f32.mrf.mxu0
    %v1016 = vadd.f32 0.0, %v1015
    %1017 = vmatprep.mubr.f32.mxu0 0.0
    %1018 = vmatmul.mubr.f32.gmra.mxu0 %v859
    %v1019 = vpop.f32.mrf.mxu0
    %v1020 = vadd.f32 0.0, %v1019
    %v1021 = vpop.f32.mrf.mxu0
    %v1022 = vadd.f32 0.0, %v1021
    %1023 = vmatprep.mubr.f32.mxu0 0.0
    %1024 = vmatmul.mubr.f32.gmra.mxu0 %v862
    %v1025 = vpop.f32.mrf.mxu0
    %v1026 = vadd.f32 0.0, %v1025
    %v1027 = vpop.f32.mrf.mxu0
    %v1028 = vadd.f32 0.0, %v1027
    %1029 = vdwg.mxu0
    %1031 = vrot.lane.b32.xlu0 %v1016, 1
    %v1032 = vpop.permute.xlu0 %1031
    %1037 = vrot.lane.b32.xlu0 %v931, 1
    %v1038 = vpop.permute.xlu0 %1037
    %1039 = vrot.lane.b32.xlu0 %v933, 1
    %v1040 = vpop.permute.xlu0 %1039
    %1041 = vrot.lane.b32.xlu0 %v1014, 1
    %v1042 = vpop.permute.xlu0 %1041
    %v1043 = vsel %vm387, %v1038, %v1040
    %v1044 = vsel %vm387, %v1040, %v1042
    %v1045 = vsel %vm387, %v1042, %v1032
    %v1050 = vsel %vm387, %v1032, %v1038
    %v1051 = vmul.f32 %v1050, %v123
    %v1052 = vmul.f32 %v1043, %v124
    %v1053 = vmul.f32 %v1044, %v125
    %v1054 = vmul.f32 %v1045, %v126
    %1059 = vrot.lane.b32.xlu0 %v943, 127
    %v1060 = vpop.permute.xlu0 %1059
    %1061 = vrot.lane.b32.xlu0 %v945, 127
    %v1062 = vpop.permute.xlu0 %1061
    %1063 = vrot.lane.b32.xlu0 %v1026, 127
    %v1064 = vpop.permute.xlu0 %1063
    %1065 = vrot.lane.b32.xlu0 %v1028, 127
    %v1066 = vpop.permute.xlu0 %1065
    %v1067 = vsel %vm412, %v1060, %v1062
    %v1068 = vsel %vm412, %v1062, %v1064
    %v1069 = vsel %vm412, %v1064, %v1066
    %v1075 = vsel %vm412, %v1066, %v1060
    %v1076 = vmul.f32 %v1067, %v135
    %v1077 = vmul.f32 %v1068, %v136
    %v1078 = vmul.f32 %v1069, %v137
    %v1079 = vmul.f32 %v1075, %v138
    %v1080 = vadd.f32 %v937, %v1051
    %v1081 = vadd.f32 %v939, %v1052
    %v1082 = vadd.f32 %v1020, %v1053
    %v1083 = vadd.f32 %v1022, %v1054
    %v1084 = vadd.f32 %v1080, %v1076
    %v1085 = vadd.f32 %v1081, %v1077
    %v1086 = vadd.f32 %v1082, %v1078
    %v1087 = vadd.f32 %v1083, %v1079
    %vm1088 = vcmp.ge.f32.partialorder %v1084, 0.0
    %vm1089 = vcmp.ge.f32.partialorder %v1085, 0.0
    %vm1090 = vcmp.ge.f32.partialorder %v1086, 0.0
    %vm1091 = vcmp.ge.f32.partialorder %v1087, 0.0
    %v1092 = vmul.f32 %v1084, 0.2
    %v1093 = vmul.f32 %v1085, 0.2
    %v1094 = vmul.f32 %v1086, 0.2
    %v1095 = vmul.f32 %v1087, 0.2
    %v1096 = vsel %vm1088, %v1084, %v1092
    %v1097 = vsel %vm1089, %v1085, %v1093
    %v1098 = vsel %vm1090, %v1086, %v1094
    %v1099 = vsel %vm1091, %v1087, %v1095
    %v1100 = vadd.f32 %v430, %v1096
    %v1101 = vadd.f32 %v431, %v1097
    %v1102 = vadd.f32 %v432, %v1098
    %v1103 = vadd.f32 %v433, %v1099
    %v1104 = vadd.f32 %v430, %v1100
    %v1105 = vadd.f32 %v431, %v1101
    %v1106 = vadd.f32 %v432, %v1102
    %v1107 = vadd.f32 %v433, %v1103
    %1108 = vst [vmem:[#allocation10] sm:$0xff] %v1104
    %1109 = vst [vmem:[#allocation10 + $0x8] sm:$0xff] %v1105
    %1110 = vst [vmem:[#allocation10 + $0x10] sm:$0xff] %v1106
    %1111 = vst [vmem:[#allocation10 + $0x18] sm:$0xff] %v1107
    // Predicated region
    $region38: #{tpu_custom_call.1} parent=1 // pred_check
      _
    $region39: #{tpu_custom_call.1} parent=1 // pred_check_branch
      %1113 = sbr.rel (0) target = $region41
    $region40: #{tpu_custom_call.1} parent=1 // pred_region
      %s1115 = ssub.s32 512, 512
      %1116 = vsyncadd [#allocation4], %s1115
      %s1118 = sshll.u32 [#allocation10], 4
      %s1119 = int_to_ptr.vmem [resolvable:$true] %s1118
      %1121 = dma.vmem_to_hbm [thread:$0]  %s1119, 512, %s5, [#allocation4]
    $region41: #{tpu_custom_call.1} parent=1 // pred_fallthru
      _
    // Predicated region
    $region42: #{tpu_custom_call.1} parent=1 // pred_check
      _
    $region43: #{tpu_custom_call.1} parent=1 // pred_check_branch
      %1123 = sbr.rel (0) target = $region45
    $region44: #{tpu_custom_call.1} parent=1 // pred_region
      %1124 = dma.done [#allocation4], 512
    $region45: #{tpu_custom_call.1} parent=1 // pred_fallthru
      _
    %1125 = vsyncpa [#allocation3], 1
    %1126 = vsyncpa [#allocation6], 1
    %1127 = vsyncpa [#allocation9], 1
    %1128 = vsyncpa [#allocation4], 1

</llo_original>
